<compile_context>
chip_gen: v7x
topology: tpu7x:2x2x1
jax: 0.10.0
libtpu: 0.0.40
codegen_flags: <defaults>
</compile_context>

<pallas_src>
import jax
import jax.numpy as jnp
from jax.experimental import pallas as pl
from jax.experimental.pallas import tpu as pltpu


def _coder_forward_kernel(in_ref, out_ref):
    # Identity forward: copy the current (tile_rows, lane_dim) block unchanged.
    out_ref[...] = in_ref[...]


def _sublane_multiple(dtype):
    # Second-to-last block dim must be a multiple of 8 for 32-bit dtypes;
    # sub-32-bit dtypes pack along sublanes (16 for 2-byte, 32 for 1-byte).
    itemsize = jnp.dtype(dtype).itemsize
    return {4: 8, 2: 16, 1: 32}.get(itemsize, 8)


def _identity_copy_pallas(x):
    """Lane-dense, row-tiled identity copy through VMEM via a Pallas kernel."""
    orig_shape = x.shape
    dtype = x.dtype
    itemsize = jnp.dtype(dtype).itemsize
    n = x.size

    flat = x.reshape(-1)

    # Lane-dense layout: a large multiple of 128 in the last dim so stores are
    # full (unmasked) vst; fall back to 128 lanes for tiny inputs.
    lane_dim = 1024 if n >= 1024 else 128
    sublane = _sublane_multiple(dtype)

    rows = pl.cdiv(n, lane_dim)

    # Target ~2 MiB blocks: with double buffering of both input and output the
    # resident working set is ~4x block_bytes (<= 8 MiB), which fits every
    # generation's default scoped VMEM (v5e 16 MiB, v6e/v7x 32 MiB).
    target_block_bytes = 2 * 1024 * 1024
    tile_rows = max(
        sublane,
        (target_block_bytes // (lane_dim * itemsize)) // sublane * sublane,
    )
    rows_ceil = pl.cdiv(rows, sublane) * sublane
    tile_rows = min(tile_rows, rows_ceil)

    # Pad so every grid step sees a full (tile_rows, lane_dim) block: keeps the
    # (8,128) tiling rule satisfied and avoids masked partial blocks.
    rows_padded = pl.cdiv(rows, tile_rows) * tile_rows
    n_padded = rows_padded * lane_dim
    if n_padded != n:
        flat = jnp.pad(flat, (0, n_padded - n))
    x2d = flat.reshape(rows_padded, lane_dim)

    grid = (rows_padded // tile_rows,)

    out2d = pl.pallas_call(
        _coder_forward_kernel,
        out_shape=jax.ShapeDtypeStruct((rows_padded, lane_dim), dtype),
        grid_spec=pl.GridSpec(
            grid=grid,
            in_specs=[pl.BlockSpec((tile_rows, lane_dim), lambda i: (i, 0))],
            out_specs=pl.BlockSpec((tile_rows, lane_dim), lambda i: (i, 0)),
        ),
        # Identity: let the output alias the (padded) input buffer.
        input_output_aliases={0: 0},
        # Pure memory traffic: zero flops, read + write of the padded array.
        cost_estimate=pl.CostEstimate(
            flops=0,
            transcendentals=0,
            bytes_accessed=2 * n_padded * itemsize,
        ),
        compiler_params=pltpu.CompilerParams(
            # Row axis is independent -> shardable across v7x's 2 TensorCores.
            dimension_semantics=("parallel",),
        ),
    )(x2d)

    return out2d.reshape(-1)[:n].reshape(orig_shape)


class Coder:
    """
    JAX/Pallas port of the abstract PyTorch `Coder` base class.

    Parameters
    ----------
    num_in : int
        Number of input units for a forward pass of the coder.
    num_out : int
        Number of output units from a forward pass of the coder.
    in_dim : int
        Dimension of flattened inputs to the coder.
    """

    def __init__(self, num_in, num_out, in_dim):
        self.num_in = num_in
        self.num_out = num_out
        self.in_dim = in_dim
        # No parameters: the PyTorch base class registers none.

    def forward(self, in_data):
        """Identity pass-through implemented as a tiled, lane-dense Pallas
        TPU copy kernel.

        in_data: jnp.ndarray, typically (batch, in_dim).
        """
        if in_data.ndim == 2:
            assert in_data.shape[-1] == self.in_dim, \
                "input last dim must equal in_dim"
        return _identity_copy_pallas(in_data)

    def __call__(self, in_data):
        return self.forward(in_data)


if __name__ == "__main__":
    key = jax.random.PRNGKey(0)

    # Small shapes consistent with the module: num_in units, flattened in_dim.
    batch = 2
    num_in = 4
    num_out = 4
    in_dim = 32  # flattened input dimension

    coder = Coder(num_in=num_in, num_out=num_out, in_dim=in_dim)

    x = jax.random.normal(key, (batch, in_dim), dtype=jnp.float32)
    y = jax.block_until_ready(coder(x))
    assert y.shape == x.shape
    assert bool(jnp.allclose(y, x))

    # Second check: a shape large enough to exercise the lane-dense reshape
    # and a multi-step (grid > 1) pipelined copy path.
    key2 = jax.random.PRNGKey(1)
    coder2 = Coder(num_in=num_in, num_out=num_out, in_dim=4096)
    x2 = jax.random.normal(key2, (256, 4096), dtype=jnp.float32)
    y2 = jax.block_until_ready(coder2(x2))
    assert y2.shape == x2.shape
    assert bool(jnp.allclose(y2, x2))

    print("KERNEL_OK")
</pallas_src>

<mosaic_0001>
module attributes {stable_mosaic.version = 11 : i64} {
  func.func @_coder_forward_kernel(%arg0: i32, %arg1: memref<8x128xf32, #tpu.memory_space<vmem>>, %arg2: memref<8x128xf32, #tpu.memory_space<vmem>>) attributes {dimension_semantics = [#tpu.dimension_semantics<parallel>], iteration_bounds = array<i64: 1>, scalar_prefetch = 0 : i64, scratch_operands = 0 : i64, tpu.core_type = #tpu.core_type<tc>, window_params = [{transform_indices = @transform_0, window_bounds = array<i64: 8, 128>}, {transform_indices = @transform_1, window_bounds = array<i64: 8, 128>}]} {
    %c0 = arith.constant 0 : index
    %c0_0 = arith.constant 0 : index
    %0 = vector.load %arg1[%c0, %c0_0] : memref<8x128xf32, #tpu.memory_space<vmem>>, vector<8x128xf32>
    %c0_1 = arith.constant 0 : index
    %c0_2 = arith.constant 0 : index
    %1 = vector.load %arg2[%c0_1, %c0_2] : memref<8x128xf32, #tpu.memory_space<vmem>>, vector<8x128xf32>
    tpu.vector_store %arg2[%c0_1, %c0_2], %0 {strides = array<i32>} : memref<8x128xf32, #tpu.memory_space<vmem>>, vector<8x128xf32>,
    return
  }
  func.func @transform_0(%arg0: i32) -> (i32, i32) {
    %c0_i32 = arith.constant 0 : i32
    %c0_i32_0 = arith.constant 0 : i32
    return %arg0, %c0_i32 : i32, i32
  }
  func.func @transform_1(%arg0: i32) -> (i32, i32) {
    %c0_i32 = arith.constant 0 : i32
    %c0_i32_0 = arith.constant 0 : i32
    return %arg0, %c0_i32 : i32, i32
  }
}

</mosaic_0001>

<llo_original>
// kernel: tpu_custom_call.1
$region0: #{tpu_custom_call.1}
  #allocation0 [shape = 'u32[]', space=smem, size = 0x4, offset = 0x4, fixed_abs, tag = 'smem constant byte address 0x4 - core index']
  #allocation1 [shape = 'u32[144,128]{1,0:T(1,128)}', space=vmem, size = 0x12000, scoped, tag = 'internal scratch']
  %s0 = inlined_call_operand.hbm [shape: f32[8,128], index: 0, kind: input, shape index: {}, may-alias: {0,1}]
  %s1 = inlined_call_operand.hbm [shape: f32[8,128], index: 1, kind: output, shape index: {}, may-alias: {0,1}]
  %s2 = sld [smem:[#allocation0]]
  $region18: #{tpu_custom_call.1} parent=0
    _
  %s4 = ssub.s32 1, %s2
  %s5 = scalar_select 0, %s4, %s2
  $region1: #{tpu_custom_call.1} parent=0
    #allocation2 [shape = 'u8[4096]{0}', space=vmem, size = 0x1000, scoped, tag = 'input window, operand 0, single buffered']
    #allocation3 [shape = 's32[1]{0}', space=sflag, size = 0x4, scoped, tag = 'scoped memory for tpu_custom_call.1']
    #allocation4 [shape = 's32[1]{0}', space=sflag, size = 0x4, scoped, tag = 'scoped memory for tpu_custom_call.1']
    #allocation5 [shape = 'u8[4096]{0}', space=vmem, size = 0x1000, scoped, tag = 'output window, operand 0, single buffered']
    %6 = vsyncpa [#allocation3], 0
    %7 = vsyncpa [#allocation4], 0
    // Predicated region
    $region2: #{tpu_custom_call.1} parent=1 // pred_check
      _
    $region3: #{tpu_custom_call.1} parent=1 // pred_check_branch
      %9 = sbr.rel (0) target = $region5
    $region4: #{tpu_custom_call.1} parent=1 // pred_region
      %s11 = ssub.s32 128, 128
      %12 = vsyncadd [#allocation3], %s11
      %s14 = sshll.u32 [#allocation2], 4
      %s15 = int_to_ptr.vmem [resolvable:$true] %s14
      %17 = dma.hbm_to_vmem [thread:$0]  %s0, 128, %s15, [#allocation3]
    $region5: #{tpu_custom_call.1} parent=1 // pred_fallthru
      _
    // Predicated region
    $region6: #{tpu_custom_call.1} parent=1 // pred_check
      _
    $region7: #{tpu_custom_call.1} parent=1 // pred_check_branch
      %19 = sbr.rel (0) target = $region9
    $region8: #{tpu_custom_call.1} parent=1 // pred_region
      %20 = dma.done [#allocation3], 128
    $region9: #{tpu_custom_call.1} parent=1 // pred_fallthru
      _
    %v21 = vld [vmem:[#allocation2] sm:$0xff]
    %22 = vst [vmem:[#allocation5] sm:$0xff] %v21
    // Predicated region
    $region10: #{tpu_custom_call.1} parent=1 // pred_check
      _
    $region11: #{tpu_custom_call.1} parent=1 // pred_check_branch
      %24 = sbr.rel (0) target = $region13
    $region12: #{tpu_custom_call.1} parent=1 // pred_region
      %s26 = ssub.s32 128, 128
      %27 = vsyncadd [#allocation4], %s26
      %s29 = sshll.u32 [#allocation5], 4
      %s30 = int_to_ptr.vmem [resolvable:$true] %s29
      %32 = dma.vmem_to_hbm [thread:$0]  %s30, 128, %s1, [#allocation4]
    $region13: #{tpu_custom_call.1} parent=1 // pred_fallthru
      _
    // Predicated region
    $region14: #{tpu_custom_call.1} parent=1 // pred_check
      _
    $region15: #{tpu_custom_call.1} parent=1 // pred_check_branch
      %34 = sbr.rel (0) target = $region17
    $region16: #{tpu_custom_call.1} parent=1 // pred_region
      %35 = dma.done [#allocation4], 128
    $region17: #{tpu_custom_call.1} parent=1 // pred_fallthru
      _
    %36 = vsyncpa [#allocation3], 1
    %37 = vsyncpa [#allocation4], 1

</llo_original>
